<compile_context>
chip_gen: v6e
topology: v6e:2x2x1
jax: 0.10.0
libtpu: 0.0.40
codegen_flags: <defaults>
</compile_context>

<pallas_src>
import math

import jax
import jax.numpy as jnp
from jax.experimental import pallas as pl
from jax.experimental.pallas import tpu as pltpu


def _round_up(n: int, m: int) -> int:
    return ((n + m - 1) // m) * m


def _pad_to(a, shape):
    pads = [(0, s - d) for d, s in zip(a.shape, shape)]
    if any(p[1] for p in pads):
        a = jnp.pad(a, pads)
    return a


# ---------------------------------------------------------------------------
# Kernels
# ---------------------------------------------------------------------------

def ffn_kernel(x_ref, w1_ref, b1_ref, w2_ref, b2_ref, o_ref):
    """Resident-weight path: whole hidden dim in VMEM."""
    x = x_ref[...]                                                    # (TM, Cp) bf16
    h = jnp.dot(x, w1_ref[...], preferred_element_type=jnp.float32)  # (TM, Hp) f32
    h = jnp.maximum(h + b1_ref[...], 0.0).astype(w2_ref.dtype)       # bias+ReLU, bf16
    o = jnp.dot(h, w2_ref[...], preferred_element_type=jnp.float32)  # (TM, Cp) f32
    o_ref[...] = (o + b2_ref[...]).astype(o_ref.dtype)


def ffn_kernel_htiled(x_ref, w1_ref, b1_ref, w2_ref, b2_ref, o_ref, acc_ref):
    """H-tiled path: reduce over hidden-dim blocks into an f32 accumulator."""
    hi = pl.program_id(1)

    @pl.when(hi == 0)
    def _():
        acc_ref[...] = jnp.zeros_like(acc_ref)

    h = jnp.dot(x_ref[...], w1_ref[...], preferred_element_type=jnp.float32)
    h = jnp.maximum(h + b1_ref[...], 0.0).astype(w2_ref.dtype)
    acc_ref[...] += jnp.dot(h, w2_ref[...], preferred_element_type=jnp.float32)

    @pl.when(hi == pl.num_programs(1) - 1)
    def _():
        o_ref[...] = (acc_ref[...] + b2_ref[...]).astype(o_ref.dtype)


# ---------------------------------------------------------------------------
# Parameter preparation (one-time: pad to lane-dense shapes, cast to bf16)
# ---------------------------------------------------------------------------

def prepare_ffn_params(w1, b1, w2, b2, *, compute_dtype=jnp.bfloat16,
                       hidden_block=None):
    """Pad weights to multiples of 128 and cast once; call once per model."""
    C, H = w1.shape
    assert w2.shape == (H, C)
    Cp = _round_up(C, 128)
    if hidden_block is not None:
        th = _round_up(hidden_block, 128)
        Hp = _round_up(H, th)
        if Hp <= th:                      # single H block -> resident path
            th = None
            Hp = _round_up(H, 128)
    else:
        th = None
        Hp = _round_up(H, 128)

    return dict(
        w1=_pad_to(w1, (Cp, Hp)).astype(compute_dtype),
        b1=_pad_to(b1.reshape(1, H), (1, Hp)).astype(jnp.float32),
        w2=_pad_to(w2, (Hp, Cp)).astype(compute_dtype),
        b2=_pad_to(b2.reshape(1, C), (1, Cp)).astype(jnp.float32),
        C=C, H=H, Cp=Cp, Hp=Hp, th=th, compute_dtype=compute_dtype,
    )


def _vmem_budget(TM, Cp, Hp, TH, x_bytes, out_bytes, w_bytes, h_tiled):
    # x / out tiles are double-buffered across the M grid axis.
    total = 2 * TM * Cp * (x_bytes + out_bytes)
    if h_tiled:
        # Weight/bias slices double-buffered across the H axis + f32 accumulator.
        total += 2 * (Cp * TH * w_bytes + TH * Cp * w_bytes + TH * 4) + Cp * 4
        total += TM * Cp * 4
    else:
        # Full weights/biases, single-buffered via pl.Buffered(1).
        total += (Cp * Hp + Hp * Cp) * w_bytes + Hp * 4 + Cp * 4
    # (TM, TH) f32 intermediate + its bf16 cast copy (compiler scratch).
    total += TM * TH * (4 + w_bytes)
    # Headroom for compiler-internal scratch; clamp to sane bounds.
    return int(min(max(total * 3 // 2 + (2 << 20), 32 << 20), 128 << 20))


# ---------------------------------------------------------------------------
# Forward
# ---------------------------------------------------------------------------

def feed_forward(x, params, *, tm=512, out_dtype=None):
    """x: (..., C) -> (..., C). Fused Linear->ReLU->Linear (eval-mode dropout)."""
    C = params["C"]
    assert x.shape[-1] == C
    Cp, Hp, TH = params["Cp"], params["Hp"], params["th"]
    compute_dtype = params["compute_dtype"]
    out_dtype = compute_dtype if out_dtype is None else out_dtype

    lead = x.shape[:-1]
    M = int(math.prod(lead)) if lead else 1
    TM = max(8, min(_round_up(tm, 8), _round_up(M, 8)))
    Mp = _round_up(M, TM)                 # full final tile: unmasked vst, no OOB rows
    num_m = Mp // TM

    x2d = _pad_to(x.reshape(M, C), (Mp, Cp)).astype(compute_dtype)
    w1p, b1p, w2p, b2p = params["w1"], params["b1"], params["w2"], params["b2"]

    w_bytes = jnp.dtype(compute_dtype).itemsize
    out_bytes = jnp.dtype(out_dtype).itemsize

    h_tiled = TH is not None
    th_eff = TH if h_tiled else Hp

    cost = pl.CostEstimate(
        flops=4 * Mp * Cp * Hp,           # two matmuls
        transcendentals=0,
        bytes_accessed=Mp * Cp * (w_bytes + out_bytes)
        + (Cp * Hp + Hp * Cp) * w_bytes + (Hp + Cp) * 4,
    )
    vmem_limit = _vmem_budget(TM, Cp, Hp, th_eff, w_bytes, out_bytes, w_bytes,
                              h_tiled)

    if not h_tiled:
        resident = pl.Buffered(1)         # constant index_map -> single buffer
        grid = (num_m,)
        in_specs = [
            pl.BlockSpec((TM, Cp), lambda i: (i, 0)),                        # x
            pl.BlockSpec((Cp, Hp), lambda i: (0, 0), pipeline_mode=resident),  # w1
            pl.BlockSpec((1, Hp), lambda i: (0, 0), pipeline_mode=resident),   # b1
            pl.BlockSpec((Hp, Cp), lambda i: (0, 0), pipeline_mode=resident),  # w2
            pl.BlockSpec((1, Cp), lambda i: (0, 0), pipeline_mode=resident),   # b2
        ]
        out_spec = pl.BlockSpec((TM, Cp), lambda i: (i, 0))
        kernel = ffn_kernel
        scratch = ()
        dims = ("parallel",)
    else:
        grid = (num_m, Hp // TH)
        in_specs = [
            pl.BlockSpec((TM, Cp), lambda i, h: (i, 0)),                     # x
            pl.BlockSpec((Cp, TH), lambda i, h: (0, h)),                     # w1 slice
            pl.BlockSpec((1, TH), lambda i, h: (0, h)),                      # b1 slice
            pl.BlockSpec((TH, Cp), lambda i, h: (h, 0)),                     # w2 slice
            pl.BlockSpec((1, Cp), lambda i, h: (0, 0),
                         pipeline_mode=pl.Buffered(1)),                      # b2
        ]
        out_spec = pl.BlockSpec((TM, Cp), lambda i, h: (i, 0))
        kernel = ffn_kernel_htiled
        scratch = (pltpu.VMEM((TM, Cp), jnp.float32),)
        dims = ("parallel", "arbitrary")

    out2d = pl.pallas_call(
        kernel,
        out_shape=jax.ShapeDtypeStruct((Mp, Cp), out_dtype),
        grid=grid,
        in_specs=in_specs,
        out_specs=out_spec,
        scratch_shapes=scratch,
        compiler_params=pltpu.CompilerParams(
            dimension_semantics=dims,
            vmem_limit_bytes=vmem_limit,
        ),
        cost_estimate=cost,
    )(x2d, w1p, b1p, w2p, b2p)

    return out2d[:M, :C].reshape(*lead, C)


# ---------------------------------------------------------------------------
# Demo / correctness check
# ---------------------------------------------------------------------------

if __name__ == "__main__":
    B, T, n_embed = 2, 8, 32
    hidden = 4 * n_embed

    key = jax.random.PRNGKey(0)
    kx, kw1, kb1, kw2, kb2 = jax.random.split(key, 5)

    x = jax.random.normal(kx, (B, T, n_embed), dtype=jnp.float32)
    # PyTorch-like uniform init: U(-1/sqrt(fan_in), 1/sqrt(fan_in))
    lim1 = 1.0 / (n_embed ** 0.5)
    lim2 = 1.0 / (hidden ** 0.5)
    w1 = jax.random.uniform(kw1, (n_embed, hidden), jnp.float32, -lim1, lim1)
    b1 = jax.random.uniform(kb1, (hidden,), jnp.float32, -lim1, lim1)
    w2 = jax.random.uniform(kw2, (hidden, n_embed), jnp.float32, -lim2, lim2)
    b2 = jax.random.uniform(kb2, (n_embed,), jnp.float32, -lim2, lim2)

    def ref_bf16(xx, ww1, bb1, ww2, bb2):
        # Reference with the same bf16 operand rounding / f32 accumulation.
        to_bf = lambda a: a.astype(jnp.bfloat16).astype(jnp.float32)
        C_in = xx.shape[-1]
        h = jnp.maximum(to_bf(xx.reshape(-1, C_in)) @ to_bf(ww1) + bb1, 0.0)
        o = to_bf(h) @ to_bf(ww2) + bb2
        return o.reshape(xx.shape[:-1] + (ww2.shape[1],))

    # --- Path 1: resident weights (single-buffered), default config ---------
    params = prepare_ffn_params(w1, b1, w2, b2)
    out = jax.block_until_ready(feed_forward(x, params))
    assert out.shape == (B, T, n_embed)

    out_f32 = out.astype(jnp.float32)
    ref = ref_bf16(x, w1, b1, w2, b2)
    assert jnp.allclose(out_f32, ref, atol=5e-2, rtol=5e-2), (
        float(jnp.max(jnp.abs(out_f32 - ref))))

    # Loose sanity check against pure-f32 math as well.
    ref32 = (jnp.maximum(x.reshape(-1, n_embed) @ w1 + b1, 0.0) @ w2 + b2
             ).reshape(B, T, n_embed)
    assert jnp.allclose(out_f32, ref32, atol=1e-1, rtol=1e-1)

    # --- Path 2: H-tiled reduction (model-scale / v7x fallback), small dims --
    n2, h2 = 64, 256
    x2 = jax.random.normal(kx, (B, T, n2), dtype=jnp.float32)
    w1b = jax.random.uniform(kw1, (n2, h2), jnp.float32, -1 / n2 ** 0.5, 1 / n2 ** 0.5)
    b1b = jax.random.uniform(kb1, (h2,), jnp.float32, -1 / n2 ** 0.5, 1 / n2 ** 0.5)
    w2b = jax.random.uniform(kw2, (h2, n2), jnp.float32, -1 / h2 ** 0.5, 1 / h2 ** 0.5)
    b2b = jax.random.uniform(kb2, (n2,), jnp.float32, -1 / h2 ** 0.5, 1 / h2 ** 0.5)

    params2 = prepare_ffn_params(w1b, b1b, w2b, b2b, hidden_block=128)
    assert params2["th"] == 128 and params2["Hp"] == 256   # 2 hidden blocks
    out2 = jax.block_until_ready(feed_forward(x2, params2))
    ref2 = ref_bf16(x2, w1b, b1b, w2b, b2b)
    assert jnp.allclose(out2.astype(jnp.float32), ref2, atol=5e-2, rtol=5e-2), (
        float(jnp.max(jnp.abs(out2.astype(jnp.float32) - ref2))))

    print("KERNEL_OK")
</pallas_src>

<mosaic_0001>
module attributes {stable_mosaic.version = 11 : i64} {
  func.func @ffn_kernel(%arg0: i32, %arg1: memref<16x128xbf16, #tpu.memory_space<vmem>>, %arg2: memref<128x128xbf16, #tpu.memory_space<vmem>>, %arg3: memref<1x128xf32, #tpu.memory_space<vmem>>, %arg4: memref<128x128xbf16, #tpu.memory_space<vmem>>, %arg5: memref<1x128xf32, #tpu.memory_space<vmem>>, %arg6: memref<16x128xbf16, #tpu.memory_space<vmem>>) attributes {dimension_semantics = [#tpu.dimension_semantics<parallel>], iteration_bounds = array<i64: 1>, scalar_prefetch = 0 : i64, scratch_operands = 0 : i64, tpu.core_type = #tpu.core_type<tc>, window_params = [{transform_indices = @transform_0, window_bounds = array<i64: 16, 128>}, {pipeline_mode = #tpu.pipeline_mode<synchronous>, transform_indices = @transform_1, window_bounds = array<i64: 128, 128>}, {pipeline_mode = #tpu.pipeline_mode<synchronous>, transform_indices = @transform_2, window_bounds = array<i64: 1, 128>}, {pipeline_mode = #tpu.pipeline_mode<synchronous>, transform_indices = @transform_3, window_bounds = array<i64: 128, 128>}, {pipeline_mode = #tpu.pipeline_mode<synchronous>, transform_indices = @transform_4, window_bounds = array<i64: 1, 128>}, {transform_indices = @transform_5, window_bounds = array<i64: 16, 128>}]} {
    %c0 = arith.constant 0 : index
    %c0_0 = arith.constant 0 : index
    %0 = vector.load %arg1[%c0, %c0_0] : memref<16x128xbf16, #tpu.memory_space<vmem>>, vector<16x128xbf16>
    %c0_1 = arith.constant 0 : index
    %c0_2 = arith.constant 0 : index
    %1 = vector.load %arg2[%c0_1, %c0_2] : memref<128x128xbf16, #tpu.memory_space<vmem>>, vector<128x128xbf16>
    %cst = arith.constant dense<0.000000e+00> : vector<16x128xf32>
    %2 = tpu.matmul %0, %1, %cst {dimension_numbers = #tpu.dot_dimension_numbers<[1], [0], [0], [1], [0, 0, 1, 1], [], []>} : vector<16x128xbf16>, vector<128x128xbf16>, vector<16x128xf32> -> vector<16x128xf32>
    %c0_3 = arith.constant 0 : index
    %c0_4 = arith.constant 0 : index
    %3 = vector.load %arg3[%c0_3, %c0_4] : memref<1x128xf32, #tpu.memory_space<vmem>>, vector<1x128xf32>
    %4 = vector.broadcast %3 : vector<1x128xf32> to vector<16x128xf32>
    %5 = arith.addf %2, %4 : vector<16x128xf32>
    %cst_5 = arith.constant 0.000000e+00 : f32
    %6 = vector.broadcast %cst_5 : f32 to vector<16x128xf32>
    %7 = arith.maximumf %5, %6 : vector<16x128xf32>
    %8 = arith.truncf %7 : vector<16x128xf32> to vector<16x128xbf16>
    %c0_6 = arith.constant 0 : index
    %c0_7 = arith.constant 0 : index
    %9 = vector.load %arg4[%c0_6, %c0_7] : memref<128x128xbf16, #tpu.memory_space<vmem>>, vector<128x128xbf16>
    %cst_8 = arith.constant dense<0.000000e+00> : vector<16x128xf32>
    %10 = tpu.matmul %8, %9, %cst_8 {dimension_numbers = #tpu.dot_dimension_numbers<[1], [0], [0], [1], [0, 0, 1, 1], [], []>} : vector<16x128xbf16>, vector<128x128xbf16>, vector<16x128xf32> -> vector<16x128xf32>
    %c0_9 = arith.constant 0 : index
    %c0_10 = arith.constant 0 : index
    %11 = vector.load %arg5[%c0_9, %c0_10] : memref<1x128xf32, #tpu.memory_space<vmem>>, vector<1x128xf32>
    %12 = vector.broadcast %11 : vector<1x128xf32> to vector<16x128xf32>
    %13 = arith.addf %10, %12 : vector<16x128xf32>
    %14 = arith.truncf %13 : vector<16x128xf32> to vector<16x128xbf16>
    %c0_11 = arith.constant 0 : index
    %c0_12 = arith.constant 0 : index
    %15 = vector.load %arg6[%c0_11, %c0_12] : memref<16x128xbf16, #tpu.memory_space<vmem>>, vector<16x128xbf16>
    tpu.vector_store %arg6[%c0_11, %c0_12], %14 {strides = array<i32>} : memref<16x128xbf16, #tpu.memory_space<vmem>>, vector<16x128xbf16>,
    return
  }
  func.func @transform_0(%arg0: i32) -> (i32, i32) {
    %c0_i32 = arith.constant 0 : i32
    %c0_i32_0 = arith.constant 0 : i32
    return %arg0, %c0_i32 : i32, i32
  }
  func.func @transform_1(%arg0: i32) -> (i32, i32) {
    %c0_i32 = arith.constant 0 : i32
    %c0_i32_0 = arith.constant 0 : i32
    %c0_i32_1 = arith.constant 0 : i32
    return %c0_i32, %c0_i32_0 : i32, i32
  }
  func.func @transform_2(%arg0: i32) -> (i32, i32) {
    %c0_i32 = arith.constant 0 : i32
    %c0_i32_0 = arith.constant 0 : i32
    %c0_i32_1 = arith.constant 0 : i32
    return %c0_i32, %c0_i32_0 : i32, i32
  }
  func.func @transform_3(%arg0: i32) -> (i32, i32) {
    %c0_i32 = arith.constant 0 : i32
    %c0_i32_0 = arith.constant 0 : i32
    %c0_i32_1 = arith.constant 0 : i32
    return %c0_i32, %c0_i32_0 : i32, i32
  }
  func.func @transform_4(%arg0: i32) -> (i32, i32) {
    %c0_i32 = arith.constant 0 : i32
    %c0_i32_0 = arith.constant 0 : i32
    %c0_i32_1 = arith.constant 0 : i32
    return %c0_i32, %c0_i32_0 : i32, i32
  }
  func.func @transform_5(%arg0: i32) -> (i32, i32) {
    %c0_i32 = arith.constant 0 : i32
    %c0_i32_0 = arith.constant 0 : i32
    return %arg0, %c0_i32 : i32, i32
  }
}

</mosaic_0001>

<llo_original>
// kernel: tpu_custom_call.1
$region0: #{tpu_custom_call.1}
  #allocation0 [shape = 'u32[]', space=smem, size = 0x4, offset = 0x4, fixed_abs, tag = 'smem constant byte address 0x4 - core index']
  #allocation1 [shape = 'u32[144,128]{1,0:T(1,128)}', space=vmem, size = 0x12000, scoped, tag = 'internal scratch']
  %s0 = inlined_call_operand.hbm [shape: bf16[16,128], index: 0, kind: input, shape index: {}]
  %s1 = inlined_call_operand.hbm [shape: bf16[128,128], index: 1, kind: input, shape index: {}]
  %s2 = inlined_call_operand.vmem [shape: f32[1,128], index: 2, kind: input, shape index: {}]
  %s3 = inlined_call_operand.hbm [shape: bf16[128,128], index: 3, kind: input, shape index: {}]
  %s4 = inlined_call_operand.vmem [shape: f32[1,128], index: 4, kind: input, shape index: {}]
  %s5 = inlined_call_operand.hbm [shape: bf16[16,128], index: 5, kind: output, shape index: {}]
  %s6 = sld [smem:[#allocation0]]
  $region42: #{tpu_custom_call.1} parent=0
    _
  %s8 = ssub.s32 1, %s6
  %s9 = scalar_select 0, %s8, %s6
  $region1: #{tpu_custom_call.1} parent=0
    #allocation2 [shape = 'u8[4096]{0}', space=vmem, size = 0x1000, scoped, tag = 'input window, operand 0, single buffered']
    #allocation3 [shape = 's32[1]{0}', space=sflag, size = 0x4, scoped, tag = 'scoped memory for tpu_custom_call.1']
    #allocation4 [shape = 's32[1]{0}', space=sflag, size = 0x4, scoped, tag = 'scoped memory for tpu_custom_call.1']
    #allocation5 [shape = 'u8[32768]{0}', space=vmem, size = 0x8000, scoped, tag = 'input window, operand 1, single buffered']
    #allocation6 [shape = 's32[1]{0}', space=sflag, size = 0x4, scoped, tag = 'scoped memory for tpu_custom_call.1']
    #allocation7 [shape = 'u8[32768]{0}', space=vmem, size = 0x8000, scoped, tag = 'input window, operand 3, single buffered']
    #allocation8 [shape = 'u8[4096]{0}', space=vmem, size = 0x1000, scoped, tag = 'output window, operand 0, single buffered']
    %10 = vsyncpa [#allocation3], 0
    %11 = vsyncpa [#allocation6], 0
    %12 = vsyncpa [#allocation4], 0
    // Predicated region
    $region2: #{tpu_custom_call.1} parent=1 // pred_check
      _
    $region3: #{tpu_custom_call.1} parent=1 // pred_check_branch
      %14 = sbr.rel (0) target = $region5
    $region4: #{tpu_custom_call.1} parent=1 // pred_region
      %s16 = ssub.s32 128, 128
      %17 = vsyncadd [#allocation3], %s16
      %s18 = sshll.u32 [#allocation2], 4
      %s19 = int_to_ptr.vmem [resolvable:$true] %s18
      %24 = dma.hbm_to_vmem [thread:$0]  %s0, 128, %s19, [#allocation3], 64, 64, 4
    $region5: #{tpu_custom_call.1} parent=1 // pred_fallthru
      _
    // Predicated region
    $region6: #{tpu_custom_call.1} parent=1 // pred_check
      _
    $region7: #{tpu_custom_call.1} parent=1 // pred_check_branch
      %26 = sbr.rel (0) target = $region9
    $region8: #{tpu_custom_call.1} parent=1 // pred_region
      %s28 = ssub.s32 1024, 1024
      %29 = vsyncadd [#allocation6], %s28
      %s30 = sshll.u32 [#allocation5], 4
      %s31 = int_to_ptr.vmem [resolvable:$true] %s30
      %36 = dma.hbm_to_vmem [thread:$0]  %s1, 1024, %s31, [#allocation6], 64, 64, 4
    $region9: #{tpu_custom_call.1} parent=1 // pred_fallthru
      _
    // Predicated region
    $region10: #{tpu_custom_call.1} parent=1 // pred_check
      _
    $region11: #{tpu_custom_call.1} parent=1 // pred_check_branch
      %38 = sbr.rel (0) target = $region13
    $region12: #{tpu_custom_call.1} parent=1 // pred_region
      _
    $region13: #{tpu_custom_call.1} parent=1 // pred_fallthru
      _
    // Predicated region
    $region14: #{tpu_custom_call.1} parent=1 // pred_check
      _
    $region15: #{tpu_custom_call.1} parent=1 // pred_check_branch
      %40 = sbr.rel (0) target = $region17
    $region16: #{tpu_custom_call.1} parent=1 // pred_region
      %s42 = ssub.s32 1024, 1024
      %43 = vsyncadd [#allocation6], %s42
      %s44 = sshll.u32 [#allocation7], 4
      %s45 = int_to_ptr.vmem [resolvable:$true] %s44
      %50 = dma.hbm_to_vmem [thread:$0]  %s3, 1024, %s45, [#allocation6], 64, 64, 4
    $region17: #{tpu_custom_call.1} parent=1 // pred_fallthru
      _
    // Predicated region
    $region18: #{tpu_custom_call.1} parent=1 // pred_check
      _
    $region19: #{tpu_custom_call.1} parent=1 // pred_check_branch
      %52 = sbr.rel (0) target = $region21
    $region20: #{tpu_custom_call.1} parent=1 // pred_region
      _
    $region21: #{tpu_custom_call.1} parent=1 // pred_fallthru
      _
    // Predicated region
    $region22: #{tpu_custom_call.1} parent=1 // pred_check
      _
    $region23: #{tpu_custom_call.1} parent=1 // pred_check_branch
      %54 = sbr.rel (0) target = $region25
    $region24: #{tpu_custom_call.1} parent=1 // pred_region
      %55 = dma.done [#allocation3], 128
    $region25: #{tpu_custom_call.1} parent=1 // pred_fallthru
      _
    // Predicated region
    $region26: #{tpu_custom_call.1} parent=1 // pred_check
      _
    $region27: #{tpu_custom_call.1} parent=1 // pred_check_branch
      %57 = sbr.rel (0) target = $region29
    $region28: #{tpu_custom_call.1} parent=1 // pred_region
      %58 = dma.done [#allocation6], 1024
    $region29: #{tpu_custom_call.1} parent=1 // pred_fallthru
      _
    // Predicated region
    $region30: #{tpu_custom_call.1} parent=1 // pred_check
      _
    $region31: #{tpu_custom_call.1} parent=1 // pred_check_branch
      %60 = sbr.rel (0) target = $region33
    $region32: #{tpu_custom_call.1} parent=1 // pred_region
      %61 = dma.done [#allocation6], 1024
    $region33: #{tpu_custom_call.1} parent=1 // pred_fallthru
      _
    %v63 = vld [vmem:[#allocation2] sm:$0xf]
    %v64 = vld [vmem:[#allocation2 + $0x4] sm:$0xf]
    %v65 = vld [vmem:[#allocation5] sm:$0xf]
    %v66 = vld [vmem:[#allocation5 + $0x4] sm:$0xf]
    %v67 = vld [vmem:[#allocation5 + $0x8] sm:$0xf]
    %v68 = vld [vmem:[#allocation5 + $0xc] sm:$0xf]
    %v69 = vld [vmem:[#allocation5 + $0x10] sm:$0xf]
    %v70 = vld [vmem:[#allocation5 + $0x14] sm:$0xf]
    %v71 = vld [vmem:[#allocation5 + $0x18] sm:$0xf]
    %v72 = vld [vmem:[#allocation5 + $0x1c] sm:$0xf]
    %v73 = vld [vmem:[#allocation5 + $0x20] sm:$0xf]
    %v74 = vld [vmem:[#allocation5 + $0x24] sm:$0xf]
    %v75 = vld [vmem:[#allocation5 + $0x28] sm:$0xf]
    %v76 = vld [vmem:[#allocation5 + $0x2c] sm:$0xf]
    %v77 = vld [vmem:[#allocation5 + $0x30] sm:$0xf]
    %v78 = vld [vmem:[#allocation5 + $0x34] sm:$0xf]
    %v79 = vld [vmem:[#allocation5 + $0x38] sm:$0xf]
    %v80 = vld [vmem:[#allocation5 + $0x3c] sm:$0xf]
    %v81 = vld [vmem:[%s2] sm:$0x1]
    %v83 = vlaneseq
    %v84 = vshrl.u32 %v83, 7
    %v85 = vsub.s32 0, %v84
    %v86 = vrot.slane %v81, %v85
    %v90 = vunpack.c.l.b16 %v63
    %v91 = vunpack.c.l.b16 %v64
    %v92 = vpack.c.b16 %v91, %v90
    %v110 = vunpack.c.l.b16 %v65
    %v111 = vunpack.c.l.b16 %v66
    %v112 = vunpack.c.l.b16 %v67
    %v113 = vunpack.c.l.b16 %v68
    %v114 = vunpack.c.l.b16 %v69
    %v115 = vunpack.c.l.b16 %v70
    %v116 = vunpack.c.l.b16 %v71
    %v117 = vunpack.c.l.b16 %v72
    %v118 = vunpack.c.l.b16 %v73
    %v119 = vunpack.c.l.b16 %v74
    %v120 = vunpack.c.l.b16 %v75
    %v121 = vunpack.c.l.b16 %v76
    %v122 = vunpack.c.l.b16 %v77
    %v123 = vunpack.c.l.b16 %v78
    %v124 = vunpack.c.l.b16 %v79
    %v125 = vunpack.c.l.b16 %v80
    %v126 = vpack.c.b16 %v111, %v110
    %v127 = vpack.c.b16 %v113, %v112
    %v128 = vpack.c.b16 %v115, %v114
    %v129 = vpack.c.b16 %v117, %v116
    %v130 = vpack.c.b16 %v119, %v118
    %v131 = vpack.c.b16 %v121, %v120
    %v132 = vpack.c.b16 %v123, %v122
    %v133 = vpack.c.b16 %v125, %v124
    %142 = vmatprep.subr.bf16.mxu0 0
    %143 = vmatpush1.bf16.msra.mxu0 %v133
    %144 = vmatprep.subr.bf16.mxu0 0
    %145 = vmatpush1.bf16.msra.mxu0 %v132
    %146 = vmatprep.subr.bf16.mxu0 0
    %147 = vmatpush1.bf16.msra.mxu0 %v131
    %148 = vmatprep.subr.bf16.mxu0 0
    %149 = vmatpush1.bf16.msra.mxu0 %v130
    %150 = vmatprep.subr.bf16.mxu0 0
    %151 = vmatpush1.bf16.msra.mxu0 %v129
    %152 = vmatprep.subr.bf16.mxu0 0
    %153 = vmatpush1.bf16.msra.mxu0 %v128
    %154 = vmatprep.subr.bf16.mxu0 0
    %155 = vmatpush1.bf16.msra.mxu0 %v127
    %156 = vmatprep.subr.bf16.mxu0 0
    %157 = vmatpush1.bf16.msra.mxu0 %v126
    %158 = vmatprep.subr.bf16.mxu0 0
    %159 = vmatpush2.bf16.msra.mxu0 0
    %160 = vmatprep.subr.bf16.mxu0 0
    %161 = vmatpush2.bf16.msra.mxu0 0
    %162 = vmatprep.subr.bf16.mxu0 0
    %163 = vmatpush2.bf16.msra.mxu0 0
    %164 = vmatprep.subr.bf16.mxu0 0
    %165 = vmatpush2.bf16.msra.mxu0 0
    %166 = vmatprep.subr.bf16.mxu0 0
    %167 = vmatpush2.bf16.msra.mxu0 0
    %168 = vmatprep.subr.bf16.mxu0 0
    %169 = vmatpush2.bf16.msra.mxu0 0
    %170 = vmatprep.subr.bf16.mxu0 0
    %171 = vmatpush2.bf16.msra.mxu0 0
    %172 = vmatprep.subr.bf16.mxu0 0
    %173 = vmatpush2.bf16.msra.mxu0 0
    %174 = vmatprep.mubr.bf16.mxu0 0
    %175 = vmatmul.mubr.bf16.gmra.mxu0 %v92
    %v176 = vpop.f32.mrf.mxu0
    %v177 = vadd.f32 %v86, %v176
    %v178 = vpop.f32.mrf.mxu0
    %v179 = vpop.f32.mrf.mxu0
    %v180 = vadd.f32 %v86, %v179
    %v181 = vpop.f32.mrf.mxu0
    %182 = vdwg.mxu0
    %v183 = vmax.f32 %v177, 0.0
    %v184 = vmax.f32 %v180, 0.0
    %v185 = vpack.c.bf16 %v184, %v183
    %v186 = vld [vmem:[#allocation7] sm:$0xf]
    %v187 = vld [vmem:[#allocation7 + $0x4] sm:$0xf]
    %v188 = vld [vmem:[#allocation7 + $0x8] sm:$0xf]
    %v189 = vld [vmem:[#allocation7 + $0xc] sm:$0xf]
    %v190 = vld [vmem:[#allocation7 + $0x10] sm:$0xf]
    %v191 = vld [vmem:[#allocation7 + $0x14] sm:$0xf]
    %v192 = vld [vmem:[#allocation7 + $0x18] sm:$0xf]
    %v193 = vld [vmem:[#allocation7 + $0x1c] sm:$0xf]
    %v194 = vld [vmem:[#allocation7 + $0x20] sm:$0xf]
    %v195 = vld [vmem:[#allocation7 + $0x24] sm:$0xf]
    %v196 = vld [vmem:[#allocation7 + $0x28] sm:$0xf]
    %v197 = vld [vmem:[#allocation7 + $0x2c] sm:$0xf]
    %v198 = vld [vmem:[#allocation7 + $0x30] sm:$0xf]
    %v199 = vld [vmem:[#allocation7 + $0x34] sm:$0xf]
    %v200 = vld [vmem:[#allocation7 + $0x38] sm:$0xf]
    %v201 = vld [vmem:[#allocation7 + $0x3c] sm:$0xf]
    %v202 = vld [vmem:[%s4] sm:$0x1]
    %v204 = vlaneseq
    %v205 = vshrl.u32 %v204, 7
    %v206 = vsub.s32 0, %v205
    %v207 = vrot.slane %v202, %v206
    %v225 = vunpack.c.l.b16 %v186
    %v226 = vunpack.c.l.b16 %v187
    %v227 = vunpack.c.l.b16 %v188
    %v228 = vunpack.c.l.b16 %v189
    %v229 = vunpack.c.l.b16 %v190
    %v230 = vunpack.c.l.b16 %v191
    %v231 = vunpack.c.l.b16 %v192
    %v232 = vunpack.c.l.b16 %v193
    %v233 = vunpack.c.l.b16 %v194
    %v234 = vunpack.c.l.b16 %v195
    %v235 = vunpack.c.l.b16 %v196
    %v236 = vunpack.c.l.b16 %v197
    %v237 = vunpack.c.l.b16 %v198
    %v238 = vunpack.c.l.b16 %v199
    %v239 = vunpack.c.l.b16 %v200
    %v240 = vunpack.c.l.b16 %v201
    %v241 = vpack.c.b16 %v226, %v225
    %v242 = vpack.c.b16 %v228, %v227
    %v243 = vpack.c.b16 %v230, %v229
    %v244 = vpack.c.b16 %v232, %v231
    %v245 = vpack.c.b16 %v234, %v233
    %v246 = vpack.c.b16 %v236, %v235
    %v247 = vpack.c.b16 %v238, %v237
    %v248 = vpack.c.b16 %v240, %v239
    %257 = vmatprep.subr.bf16.mxu0 0
    %258 = vmatpush1.bf16.msra.mxu0 %v248
    %259 = vmatprep.subr.bf16.mxu0 0
    %260 = vmatpush1.bf16.msra.mxu0 %v247
    %261 = vmatprep.subr.bf16.mxu0 0
    %262 = vmatpush1.bf16.msra.mxu0 %v246
    %263 = vmatprep.subr.bf16.mxu0 0
    %264 = vmatpush1.bf16.msra.mxu0 %v245
    %265 = vmatprep.subr.bf16.mxu0 0
    %266 = vmatpush1.bf16.msra.mxu0 %v244
    %267 = vmatprep.subr.bf16.mxu0 0
    %268 = vmatpush1.bf16.msra.mxu0 %v243
    %269 = vmatprep.subr.bf16.mxu0 0
    %270 = vmatpush1.bf16.msra.mxu0 %v242
    %271 = vmatprep.subr.bf16.mxu0 0
    %272 = vmatpush1.bf16.msra.mxu0 %v241
    %273 = vmatprep.subr.bf16.mxu0 0
    %274 = vmatpush2.bf16.msra.mxu0 0
    %275 = vmatprep.subr.bf16.mxu0 0
    %276 = vmatpush2.bf16.msra.mxu0 0
    %277 = vmatprep.subr.bf16.mxu0 0
    %278 = vmatpush2.bf16.msra.mxu0 0
    %279 = vmatprep.subr.bf16.mxu0 0
    %280 = vmatpush2.bf16.msra.mxu0 0
    %281 = vmatprep.subr.bf16.mxu0 0
    %282 = vmatpush2.bf16.msra.mxu0 0
    %283 = vmatprep.subr.bf16.mxu0 0
    %284 = vmatpush2.bf16.msra.mxu0 0
    %285 = vmatprep.subr.bf16.mxu0 0
    %286 = vmatpush2.bf16.msra.mxu0 0
    %287 = vmatprep.subr.bf16.mxu0 0
    %288 = vmatpush2.bf16.msra.mxu0 0
    %289 = vmatprep.mubr.bf16.mxu0 0
    %290 = vmatmul.mubr.bf16.gmra.mxu0 %v185
    %v291 = vpop.f32.mrf.mxu0
    %v292 = vadd.f32 %v207, %v291
    %v293 = vpop.f32.mrf.mxu0
    %v294 = vpop.f32.mrf.mxu0
    %v295 = vadd.f32 %v207, %v294
    %v296 = vpop.f32.mrf.mxu0
    %297 = vdwg.mxu0
    %v298 = vpack.c.bf16 %v295, %v292
    %v300 = vunpack.c.l.b16 %v298
    %v301 = vunpack.c.h.b16 %v298
    %v302 = vpack.c.b16 %v300, %v300
    %v303 = vpack.c.b16 %v301, %v301
    %306 = vst [vmem:[#allocation8] sm:$0xf] %v302
    %307 = vst [vmem:[#allocation8 + $0x4] sm:$0xf] %v303
    // Predicated region
    $region34: #{tpu_custom_call.1} parent=1 // pred_check
      _
    $region35: #{tpu_custom_call.1} parent=1 // pred_check_branch
      %309 = sbr.rel (0) target = $region37
    $region36: #{tpu_custom_call.1} parent=1 // pred_region
      %s311 = ssub.s32 128, 128
      %312 = vsyncadd [#allocation4], %s311
      %s313 = sshll.u32 [#allocation8], 4
      %s314 = int_to_ptr.vmem [resolvable:$true] %s313
      %319 = dma.vmem_to_hbm [thread:$0]  %s314, 128, %s5, [#allocation4], 64, 64, 4
    $region37: #{tpu_custom_call.1} parent=1 // pred_fallthru
      _
    // Predicated region
    $region38: #{tpu_custom_call.1} parent=1 // pred_check
      _
    $region39: #{tpu_custom_call.1} parent=1 // pred_check_branch
      %321 = sbr.rel (0) target = $region41
    $region40: #{tpu_custom_call.1} parent=1 // pred_region
      %322 = dma.done [#allocation4], 128
    $region41: #{tpu_custom_call.1} parent=1 // pred_fallthru
      _
    %323 = vsyncpa [#allocation3], 1
    %324 = vsyncpa [#allocation6], 1
    %325 = vsyncpa [#allocation4], 1

</llo_original>
